<compile_context>
chip_gen: v6e
topology: v6e:2x2x1
jax: 0.10.0
libtpu: 0.0.40
codegen_flags: <defaults>
</compile_context>

<pallas_src>
import functools

import numpy as np
import jax
import jax.numpy as jnp
from jax import lax
from jax.experimental import pallas as pl
from jax.experimental.pallas import tpu as pltpu  # noqa: F401  (TPU backend)


# ----------------------------------------------------------------------------- kernel
def estimator_kernel(rx_ref, mask_ref, w_ref, b_ref, chest_ref, comp_ref,
                     *, n_symb, n_subc, batch):
    # rx_ref    : (B, 2*n_symb, n_subc) f32   rows [0:S]=re, [S:2S]=im per batch
    # mask_ref  : (1, n_subc)           f32   1.0 at DMRS subcarriers, else 0.0
    # w_ref     : (n_subc, n_subc)      bf16  stand-in transformer weight
    # b_ref     : (1, n_subc)           f32   stand-in transformer bias
    # chest_ref : (B, 2, n_subc)        f32   un-normalized channel estimate (out)
    # comp_ref  : (B, 2*n_symb, n_subc) f32   compensated rx, same packing (out)
    S, B = n_symb, batch
    rx = rx_ref[...]                                    # (B, 2S, F)
    mask = mask_ref[...]                                # (1, F)

    # --- stage 1: DMRS masking + per-batch rsqrt normalization ----------------
    re0 = rx[:, 0, :] * mask                            # (B, F) symbol-0 real
    im0 = rx[:, S, :] * mask                            # (B, F) symbol-0 imag
    rs = jnp.sum(re0 * re0 + im0 * im0, axis=-1, keepdims=True)   # (B, 1)
    mean_sq = rs * np.float32(1.0 / n_subc)             # reference divides by n_subc
    inv_std = lax.rsqrt(mean_sq)                        # (B, 1), EUP
    std = mean_sq * inv_std                             # == sqrt(mean_sq), no divide

    # --- stage 2: stand-in transformer, one stacked MXU matmul (M = 2B) -------
    lhs = jnp.concatenate([re0 * inv_std, im0 * inv_std], axis=0)   # (2B, F)
    est = jnp.dot(lhs.astype(jnp.bfloat16), w_ref[...],
                  preferred_element_type=jnp.float32) + b_ref[...]  # (2B, F) f32

    ch_re = est[0:B] * std                              # (B, F) un-normalized
    ch_im = est[B:2 * B] * std
    chest_ref[:, 0:1, :] = ch_re[:, None, :]
    chest_ref[:, 1:2, :] = ch_im[:, None, :]

    # --- stage 3: complex zero-forcing equalization ----------------------------
    inv_den = pl.reciprocal(ch_re * ch_re + ch_im * ch_im, approx=False)
    a = (ch_re * inv_den)[:, None, :]                   # (B, 1, F)
    c = (ch_im * inv_den)[:, None, :]                   # (B, 1, F)
    rx_re = rx[:, 0:S, :]                               # (B, S, F)
    rx_im = rx[:, S:2 * S, :]
    comp_ref[:, 0:S, :] = rx_re * a + rx_im * c         # direct slice stores,
    comp_ref[:, S:2 * S, :] = rx_im * a - rx_re * c     # no final concatenate


# ----------------------------------------------------------------------------- wrapper
def make_estimator(n_symb, n_subc, dmrs_idx, key):
    dmrs_mask = np.zeros((1, n_subc), dtype=np.float32)
    dmrs_mask[0, dmrs_idx] = 1.0
    dmrs_mask = jnp.asarray(dmrs_mask)

    # deterministic stand-in "transformer" parameters (weight kept in bf16)
    kw, _ = jax.random.split(key)
    w = (jax.random.normal(kw, (n_subc, n_subc), dtype=jnp.float32)
         / np.sqrt(n_subc)).astype(jnp.bfloat16)
    b = jnp.zeros((1, n_subc), dtype=jnp.float32)

    def forward(rx_signal):
        # rx_signal: (B, n_symb, n_subc, 2) -- original PyTorch input convention
        B = rx_signal.shape[0]
        # movedim (B,S,F,2) -> (B,2,S,F): reading the size-2 trailing dim inside
        # the kernel would be lane-sparse, so this 16 KiB shuffle stays in XLA.
        # The reshape to (B, 2*S, F) is free (contiguous) and gives the kernel
        # a sublane-dense packing: rows [0:S]=real, [S:2S]=imag per batch.
        rx = jnp.transpose(rx_signal, (0, 3, 1, 2)).astype(jnp.float32)
        rx_packed = rx.reshape(B, 2 * n_symb, n_subc)

        kernel = functools.partial(estimator_kernel,
                                   n_symb=n_symb, n_subc=n_subc, batch=B)

        # No grid: single invocation, whole-array VMEM blocks (default specs).
        # No pipelining means the weight/bias/mask are single-buffered by
        # construction; all intermediates stay in VMEM.
        ch_est, comp_packed = pl.pallas_call(
            kernel,
            out_shape=[
                jax.ShapeDtypeStruct((B, 2, n_subc), jnp.float32),
                jax.ShapeDtypeStruct((B, 2 * n_symb, n_subc), jnp.float32),
            ],
        )(rx_packed, dmrs_mask, w, b)

        rx_comp = comp_packed.reshape(B, 2, n_symb, n_subc)   # free reshape
        ch_est = jnp.transpose(ch_est, (0, 2, 1))              # (B, n_subc, 2)
        return ch_est, rx_comp

    return jax.jit(forward)


# ----------------------------------------------------------------------------- main
if __name__ == "__main__":
    B, n_symb, n_subc = 2, 4, 256
    dmrs_idx = np.arange(0, n_subc, 2)          # synthetic ref_conf_dict['dmrs'] = (0, 256, 2)

    key = jax.random.PRNGKey(0)
    k_in, k_par = jax.random.split(key)
    rx_signal = jax.random.normal(k_in, (B, n_symb, n_subc, 2), dtype=jnp.float32)

    forward = make_estimator(n_symb, n_subc, dmrs_idx, k_par)
    ch_est, rx_sig_comp = forward(rx_signal)
    jax.block_until_ready((ch_est, rx_sig_comp))

    assert ch_est.shape == (B, n_subc, 2)
    assert rx_sig_comp.shape == (B, 2, n_symb, n_subc)
    assert bool(jnp.all(jnp.isfinite(ch_est)))
    assert bool(jnp.all(jnp.isfinite(rx_sig_comp)))
    print("KERNEL_OK")
</pallas_src>

<mosaic_0001>
module attributes {stable_mosaic.version = 11 : i64} {
  func.func @estimator_kernel(%arg0: memref<2x8x256xf32, #tpu.memory_space<vmem>>, %arg1: memref<1x256xf32, #tpu.memory_space<vmem>>, %arg2: memref<256x256xbf16, #tpu.memory_space<vmem>>, %arg3: memref<1x256xf32, #tpu.memory_space<vmem>>, %arg4: memref<2x2x256xf32, #tpu.memory_space<vmem>>, %arg5: memref<2x8x256xf32, #tpu.memory_space<vmem>>) attributes {dimension_semantics = [], scalar_prefetch = 0 : i64, scratch_operands = 0 : i64, tpu.core_type = #tpu.core_type<tc>} {
    %c0 = arith.constant 0 : index
    %c0_0 = arith.constant 0 : index
    %c0_1 = arith.constant 0 : index
    %0 = vector.load %arg0[%c0, %c0_0, %c0_1] : memref<2x8x256xf32, #tpu.memory_space<vmem>>, vector<2x8x256xf32>
    %c0_2 = arith.constant 0 : index
    %c0_3 = arith.constant 0 : index
    %1 = vector.load %arg1[%c0_2, %c0_3] : memref<1x256xf32, #tpu.memory_space<vmem>>, vector<1x256xf32>
    %2 = vector.extract_strided_slice %0 {offsets = [0, 0, 0], sizes = [2, 1, 256], strides = [1, 1, 1]} : vector<2x8x256xf32> to vector<2x1x256xf32>
    %3 = vector.shape_cast %2 : vector<2x1x256xf32> to vector<2x256xf32>
    %4 = vector.broadcast %1 : vector<1x256xf32> to vector<2x256xf32>
    %5 = arith.mulf %3, %4 : vector<2x256xf32>
    %6 = vector.extract_strided_slice %0 {offsets = [0, 4, 0], sizes = [2, 1, 256], strides = [1, 1, 1]} : vector<2x8x256xf32> to vector<2x1x256xf32>
    %7 = vector.shape_cast %6 : vector<2x1x256xf32> to vector<2x256xf32>
    %8 = vector.broadcast %1 : vector<1x256xf32> to vector<2x256xf32>
    %9 = arith.mulf %7, %8 : vector<2x256xf32>
    %10 = arith.mulf %5, %5 : vector<2x256xf32>
    %11 = arith.mulf %9, %9 : vector<2x256xf32>
    %12 = arith.addf %10, %11 : vector<2x256xf32>
    %cst = arith.constant dense<0.000000e+00> : vector<2xf32>
    %13 = vector.multi_reduction <add>, %12, %cst [1] : vector<2x256xf32> to vector<2xf32>
    %14 = vector.shape_cast %13 : vector<2xf32> to vector<2x1xf32>
    %cst_4 = arith.constant 3.906250e-03 : f32
    %15 = vector.broadcast %cst_4 : f32 to vector<2x1xf32>
    %16 = arith.mulf %14, %15 : vector<2x1xf32>
    %17 = math.rsqrt %16 : vector<2x1xf32>
    %18 = arith.mulf %16, %17 : vector<2x1xf32>
    %19 = vector.broadcast %17 : vector<2x1xf32> to vector<2x256xf32>
    %20 = arith.mulf %5, %19 : vector<2x256xf32>
    %21 = vector.broadcast %17 : vector<2x1xf32> to vector<2x256xf32>
    %22 = arith.mulf %9, %21 : vector<2x256xf32>
    %23 = tpu.concatenate %20, %22 in 0 : vector<2x256xf32>, vector<2x256xf32> -> vector<4x256xf32>
    %24 = arith.truncf %23 : vector<4x256xf32> to vector<4x256xbf16>
    %c0_5 = arith.constant 0 : index
    %c0_6 = arith.constant 0 : index
    %25 = vector.load %arg2[%c0_5, %c0_6] : memref<256x256xbf16, #tpu.memory_space<vmem>>, vector<256x256xbf16>
    %cst_7 = arith.constant dense<0.000000e+00> : vector<4x256xf32>
    %26 = tpu.matmul %24, %25, %cst_7 {dimension_numbers = #tpu.dot_dimension_numbers<[1], [0], [0], [1], [0, 0, 1, 1], [], []>} : vector<4x256xbf16>, vector<256x256xbf16>, vector<4x256xf32> -> vector<4x256xf32>
    %c0_8 = arith.constant 0 : index
    %c0_9 = arith.constant 0 : index
    %27 = vector.load %arg3[%c0_8, %c0_9] : memref<1x256xf32, #tpu.memory_space<vmem>>, vector<1x256xf32>
    %28 = vector.broadcast %27 : vector<1x256xf32> to vector<4x256xf32>
    %29 = arith.addf %26, %28 : vector<4x256xf32>
    %30 = vector.extract_strided_slice %29 {offsets = [0, 0], sizes = [2, 256], strides = [1, 1]} : vector<4x256xf32> to vector<2x256xf32>
    %31 = vector.broadcast %18 : vector<2x1xf32> to vector<2x256xf32>
    %32 = arith.mulf %30, %31 : vector<2x256xf32>
    %33 = vector.extract_strided_slice %29 {offsets = [2, 0], sizes = [2, 256], strides = [1, 1]} : vector<4x256xf32> to vector<2x256xf32>
    %34 = vector.broadcast %18 : vector<2x1xf32> to vector<2x256xf32>
    %35 = arith.mulf %33, %34 : vector<2x256xf32>
    %36 = vector.shape_cast %32 : vector<2x256xf32> to vector<2x1x256xf32>
    %c0_10 = arith.constant 0 : index
    %c0_11 = arith.constant 0 : index
    %c0_12 = arith.constant 0 : index
    %37 = vector.load %arg4[%c0_10, %c0_11, %c0_12] : memref<2x2x256xf32, #tpu.memory_space<vmem>>, vector<2x1x256xf32>
    tpu.vector_store %arg4[%c0_10, %c0_11, %c0_12], %36 {strides = array<i32>} : memref<2x2x256xf32, #tpu.memory_space<vmem>>, vector<2x1x256xf32>,
    %38 = vector.shape_cast %35 : vector<2x256xf32> to vector<2x1x256xf32>
    %c0_13 = arith.constant 0 : index
    %c1 = arith.constant 1 : index
    %c0_14 = arith.constant 0 : index
    %39 = vector.load %arg4[%c0_13, %c1, %c0_14] : memref<2x2x256xf32, #tpu.memory_space<vmem>>, vector<2x1x256xf32>
    tpu.vector_store %arg4[%c0_13, %c1, %c0_14], %38 {strides = array<i32>} : memref<2x2x256xf32, #tpu.memory_space<vmem>>, vector<2x1x256xf32>,
    %40 = arith.mulf %32, %32 : vector<2x256xf32>
    %41 = arith.mulf %35, %35 : vector<2x256xf32>
    %42 = arith.addf %40, %41 : vector<2x256xf32>
    %43 = tpu.reciprocal %42 : vector<2x256xf32> -> vector<2x256xf32>
    %44 = arith.mulf %32, %43 : vector<2x256xf32>
    %45 = vector.shape_cast %44 : vector<2x256xf32> to vector<2x1x256xf32>
    %46 = arith.mulf %35, %43 : vector<2x256xf32>
    %47 = vector.shape_cast %46 : vector<2x256xf32> to vector<2x1x256xf32>
    %48 = vector.extract_strided_slice %0 {offsets = [0, 0, 0], sizes = [2, 4, 256], strides = [1, 1, 1]} : vector<2x8x256xf32> to vector<2x4x256xf32>
    %49 = vector.extract_strided_slice %0 {offsets = [0, 4, 0], sizes = [2, 4, 256], strides = [1, 1, 1]} : vector<2x8x256xf32> to vector<2x4x256xf32>
    %50 = vector.broadcast %45 : vector<2x1x256xf32> to vector<2x4x256xf32>
    %51 = arith.mulf %48, %50 : vector<2x4x256xf32>
    %52 = vector.broadcast %47 : vector<2x1x256xf32> to vector<2x4x256xf32>
    %53 = arith.mulf %49, %52 : vector<2x4x256xf32>
    %54 = arith.addf %51, %53 : vector<2x4x256xf32>
    %c0_15 = arith.constant 0 : index
    %c0_16 = arith.constant 0 : index
    %c0_17 = arith.constant 0 : index
    %55 = vector.load %arg5[%c0_15, %c0_16, %c0_17] : memref<2x8x256xf32, #tpu.memory_space<vmem>>, vector<2x4x256xf32>
    tpu.vector_store %arg5[%c0_15, %c0_16, %c0_17], %54 {strides = array<i32>} : memref<2x8x256xf32, #tpu.memory_space<vmem>>, vector<2x4x256xf32>,
    %56 = vector.broadcast %45 : vector<2x1x256xf32> to vector<2x4x256xf32>
    %57 = arith.mulf %49, %56 : vector<2x4x256xf32>
    %58 = vector.broadcast %47 : vector<2x1x256xf32> to vector<2x4x256xf32>
    %59 = arith.mulf %48, %58 : vector<2x4x256xf32>
    %60 = arith.subf %57, %59 : vector<2x4x256xf32>
    %c0_18 = arith.constant 0 : index
    %c4 = arith.constant 4 : index
    %c0_19 = arith.constant 0 : index
    %61 = vector.load %arg5[%c0_18, %c4, %c0_19] : memref<2x8x256xf32, #tpu.memory_space<vmem>>, vector<2x4x256xf32>
    tpu.vector_store %arg5[%c0_18, %c4, %c0_19], %60 {strides = array<i32>} : memref<2x8x256xf32, #tpu.memory_space<vmem>>, vector<2x4x256xf32>,
    return
  }
}

</mosaic_0001>

<llo_original>
// kernel: forward.1
$region0: #{forward.1}
  #allocation0 [shape = 'u32[]', space=smem, size = 0x4, offset = 0x4, fixed_abs, tag = 'smem constant byte address 0x4 - core index']
  #allocation1 [shape = 'u32[144,128]{1,0:T(1,128)}', space=vmem, size = 0x12000, scoped, tag = 'internal scratch']
  %s0 = inlined_call_operand.vmem [shape: f32[2,8,256], index: 0, kind: input, shape index: {}]
  %s1 = inlined_call_operand.vmem [shape: f32[1,256], index: 1, kind: input, shape index: {}]
  %s2 = inlined_call_operand.hbm [shape: bf16[256,256], index: 2, kind: input, shape index: {}]
  %s3 = inlined_call_operand.vmem [shape: f32[1,256], index: 3, kind: input, shape index: {}]
  %s4 = inlined_call_operand.hbm [shape: f32[2,2,256], index: 4, kind: output, shape index: {0}]
  %s5 = inlined_call_operand.vmem [shape: f32[2,8,256], index: 5, kind: output, shape index: {1}]
  %6 = xla_tuple %s4, %s5
  %s7 = sld [smem:[#allocation0]]
  $region38: #{forward.1} parent=0
    _
  %s9 = ssub.s32 1, %s7
  %s10 = scalar_select 0, %s9, %s7
  $region1: #{forward.1} parent=0
    #allocation2 [shape = 'u8[131072]{0}', space=vmem, size = 0x20000, scoped, tag = 'input window, operand 2, single buffered']
    #allocation3 [shape = 's32[1]{0}', space=sflag, size = 0x4, scoped, tag = 'scoped memory for forward.1']
    #allocation4 [shape = 's32[1]{0}', space=sflag, size = 0x4, scoped, tag = 'scoped memory for forward.1']
    #allocation5 [shape = 'u8[4096]{0}', space=vmem, size = 0x1000, scoped, tag = 'output window, operand 0, single buffered']
    %11 = vsyncpa [#allocation3], 0
    %12 = vsyncpa [#allocation4], 0
    // Predicated region
    $region2: #{forward.1} parent=1 // pred_check
      _
    $region3: #{forward.1} parent=1 // pred_check_branch
      %14 = sbr.rel (0) target = $region5
    $region4: #{forward.1} parent=1 // pred_region
      _
    $region5: #{forward.1} parent=1 // pred_fallthru
      _
    // Predicated region
    $region6: #{forward.1} parent=1 // pred_check
      _
    $region7: #{forward.1} parent=1 // pred_check_branch
      %16 = sbr.rel (0) target = $region9
    $region8: #{forward.1} parent=1 // pred_region
      _
    $region9: #{forward.1} parent=1 // pred_fallthru
      _
    // Predicated region
    $region10: #{forward.1} parent=1 // pred_check
      _
    $region11: #{forward.1} parent=1 // pred_check_branch
      %18 = sbr.rel (0) target = $region13
    $region12: #{forward.1} parent=1 // pred_region
      %s20 = ssub.s32 4096, 4096
      %21 = vsyncadd [#allocation3], %s20
      %s22 = sshll.u32 [#allocation2], 4
      %s23 = int_to_ptr.vmem [resolvable:$true] %s22
      %28 = dma.hbm_to_vmem [thread:$0]  %s2, 4096, %s23, [#allocation3], 128, 128, 8
    $region13: #{forward.1} parent=1 // pred_fallthru
      _
    // Predicated region
    $region14: #{forward.1} parent=1 // pred_check
      _
    $region15: #{forward.1} parent=1 // pred_check_branch
      %30 = sbr.rel (0) target = $region17
    $region16: #{forward.1} parent=1 // pred_region
      _
    $region17: #{forward.1} parent=1 // pred_fallthru
      _
    // Predicated region
    $region18: #{forward.1} parent=1 // pred_check
      _
    $region19: #{forward.1} parent=1 // pred_check_branch
      %32 = sbr.rel (0) target = $region21
    $region20: #{forward.1} parent=1 // pred_region
      %33 = dma.done [#allocation3], 4096
    $region21: #{forward.1} parent=1 // pred_fallthru
      _
    %v34 = vld [vmem:[%s0] sm:$0xff]
    %v35 = vld [vmem:[%s0 + $0x8] sm:$0xff]
    %v36 = vld [vmem:[%s0 + $0x10] sm:$0xff]
    %v37 = vld [vmem:[%s0 + $0x18] sm:$0xff]
    %v38 = vld [vmem:[%s1] sm:$0x3]
    %v40 = vlaneseq
    %v41 = vshrl.u32 %v40, 7
    %v42 = vsub.s32 0, %v41
    %v43 = vrot.slane %v38, %v42
    %v44 = vlaneseq
    %v45 = vshrl.u32 %v44, 7
    %v46 = vsub.s32 1, %v45
    %v47 = vrot.slane %v38, %v46
    %v50 = vmul.f32 %v34, %v43
    %v51 = vmul.f32 %v35, %v47
    %v52 = vmul.f32 %v36, %v43
    %v53 = vmul.f32 %v37, %v47
    %v54 = vmul.f32 %v50, %v50
    %v55 = vmul.f32 %v51, %v51
    %v56 = vmul.f32 %v52, %v52
    %v57 = vmul.f32 %v53, %v53
    %v62 = vrot.slane %v54, 4
    %v63 = vrot.slane %v55, 4
    %v64 = vrot.slane %v56, 4
    %v65 = vrot.slane %v57, 4
    %v70 = vadd.f32 %v54, %v62
    %v71 = vadd.f32 %v55, %v63
    %v72 = vadd.f32 %v56, %v64
    %v73 = vadd.f32 %v57, %v65
    %v78 = vrot.slane %v72, 7
    %vm79 = vcmask 1041409
    %v80 = vsel %vm79, %v78, %v70
    %v81 = vrot.slane %v73, 7
    %v82 = vsel %vm79, %v81, %v71
    %vm85 = vcmask 1041408
    %v86 = vsel %vm85, %v80, 0.0
    %v87 = vsel %vm85, %v82, 0.0
    %v88 = vadd.f32 %v86, %v87
    %89 = vadd.xlane.f32.xlu0 %v88
    %v90 = vpop.xlane.xlu0 %89
    %v91 = vmul.f32 %v90, 0.00390625
    %v92 = vrsqrt.pop %v91
    %v93 = vmul.f32 %v91, %v92
    %v95 = vrot.slane %v92, 1
    %v98 = vmul.f32 %v50, %v92
    %v99 = vmul.f32 %v51, %v92
    %v100 = vmul.f32 %v52, %v95
    %v101 = vmul.f32 %v53, %v95
    %v102 = vrot.slane %v92, 4
    %v103 = vrot.slane %v92, 5
    %v106 = vmul.f32 %v50, %v102
    %v107 = vmul.f32 %v51, %v102
    %v108 = vmul.f32 %v52, %v103
    %v109 = vmul.f32 %v53, %v103
    %v114 = vrot.slane %v100, 7
    %v115 = vsel %vm79, %v114, %v98
    %v116 = vrot.slane %v101, 7
    %v117 = vsel %vm79, %v116, %v99
    %v124 = vrot.slane %v106, 2
    %v125 = vrot.slane %v108, 1
    %vm126 = vcmask 1043459
    %v127 = vsel %vm126, %v125, %v124
    %v128 = vrot.slane %v107, 2
    %v129 = vrot.slane %v109, 1
    %v130 = vsel %vm126, %v129, %v128
    %v133 = vsel %vm85, %v115, %v127
    %v134 = vsel %vm85, %v117, %v130
    %v135 = vpack.c.bf16 %v133, %v133
    %v136 = vpack.c.bf16 %v134, %v134
    %v137 = vld [vmem:[#allocation2] sm:$0xff]
    %v138 = vld [vmem:[#allocation2 + $0x8] sm:$0xff]
    %v139 = vld [vmem:[#allocation2 + $0x10] sm:$0xff]
    %v140 = vld [vmem:[#allocation2 + $0x18] sm:$0xff]
    %v141 = vld [vmem:[#allocation2 + $0x20] sm:$0xff]
    %v142 = vld [vmem:[#allocation2 + $0x28] sm:$0xff]
    %v143 = vld [vmem:[#allocation2 + $0x30] sm:$0xff]
    %v144 = vld [vmem:[#allocation2 + $0x38] sm:$0xff]
    %v145 = vld [vmem:[#allocation2 + $0x40] sm:$0xff]
    %v146 = vld [vmem:[#allocation2 + $0x48] sm:$0xff]
    %v147 = vld [vmem:[#allocation2 + $0x50] sm:$0xff]
    %v148 = vld [vmem:[#allocation2 + $0x58] sm:$0xff]
    %v149 = vld [vmem:[#allocation2 + $0x60] sm:$0xff]
    %v150 = vld [vmem:[#allocation2 + $0x68] sm:$0xff]
    %v151 = vld [vmem:[#allocation2 + $0x70] sm:$0xff]
    %v152 = vld [vmem:[#allocation2 + $0x78] sm:$0xff]
    %v153 = vld [vmem:[#allocation2 + $0x80] sm:$0xff]
    %v154 = vld [vmem:[#allocation2 + $0x88] sm:$0xff]
    %v155 = vld [vmem:[#allocation2 + $0x90] sm:$0xff]
    %v156 = vld [vmem:[#allocation2 + $0x98] sm:$0xff]
    %v157 = vld [vmem:[#allocation2 + $0xa0] sm:$0xff]
    %v158 = vld [vmem:[#allocation2 + $0xa8] sm:$0xff]
    %v159 = vld [vmem:[#allocation2 + $0xb0] sm:$0xff]
    %v160 = vld [vmem:[#allocation2 + $0xb8] sm:$0xff]
    %v161 = vld [vmem:[#allocation2 + $0xc0] sm:$0xff]
    %v162 = vld [vmem:[#allocation2 + $0xc8] sm:$0xff]
    %v163 = vld [vmem:[#allocation2 + $0xd0] sm:$0xff]
    %v164 = vld [vmem:[#allocation2 + $0xd8] sm:$0xff]
    %v165 = vld [vmem:[#allocation2 + $0xe0] sm:$0xff]
    %v166 = vld [vmem:[#allocation2 + $0xe8] sm:$0xff]
    %v167 = vld [vmem:[#allocation2 + $0xf0] sm:$0xff]
    %v168 = vld [vmem:[#allocation2 + $0xf8] sm:$0xff]
    %v169 = vld [vmem:[%s3] sm:$0x3]
    %v171 = vlaneseq
    %v172 = vshrl.u32 %v171, 7
    %v173 = vsub.s32 0, %v172
    %v174 = vrot.slane %v169, %v173
    %v175 = vlaneseq
    %v176 = vshrl.u32 %v175, 7
    %v177 = vsub.s32 1, %v176
    %v178 = vrot.slane %v169, %v177
    %v213 = vunpack.c.l.b16 %v137
    %v214 = vunpack.c.h.b16 %v137
    %v215 = vunpack.c.l.b16 %v138
    %v216 = vunpack.c.h.b16 %v138
    %v217 = vunpack.c.l.b16 %v139
    %v218 = vunpack.c.h.b16 %v139
    %v219 = vunpack.c.l.b16 %v140
    %v220 = vunpack.c.h.b16 %v140
    %v221 = vunpack.c.l.b16 %v141
    %v222 = vunpack.c.h.b16 %v141
    %v223 = vunpack.c.l.b16 %v142
    %v224 = vunpack.c.h.b16 %v142
    %v225 = vunpack.c.l.b16 %v143
    %v226 = vunpack.c.h.b16 %v143
    %v227 = vunpack.c.l.b16 %v144
    %v228 = vunpack.c.h.b16 %v144
    %v229 = vunpack.c.l.b16 %v145
    %v230 = vunpack.c.h.b16 %v145
    %v231 = vunpack.c.l.b16 %v146
    %v232 = vunpack.c.h.b16 %v146
    %v233 = vunpack.c.l.b16 %v147
    %v234 = vunpack.c.h.b16 %v147
    %v235 = vunpack.c.l.b16 %v148
    %v236 = vunpack.c.h.b16 %v148
    %v237 = vunpack.c.l.b16 %v149
    %v238 = vunpack.c.h.b16 %v149
    %v239 = vunpack.c.l.b16 %v150
    %v240 = vunpack.c.h.b16 %v150
    %v241 = vunpack.c.l.b16 %v151
    %v242 = vunpack.c.h.b16 %v151
    %v243 = vunpack.c.l.b16 %v152
    %v244 = vunpack.c.h.b16 %v152
    %v245 = vunpack.c.l.b16 %v153
    %v246 = vunpack.c.h.b16 %v153
    %v247 = vunpack.c.l.b16 %v154
    %v248 = vunpack.c.h.b16 %v154
    %v249 = vunpack.c.l.b16 %v155
    %v250 = vunpack.c.h.b16 %v155
    %v251 = vunpack.c.l.b16 %v156
    %v252 = vunpack.c.h.b16 %v156
    %v253 = vunpack.c.l.b16 %v157
    %v254 = vunpack.c.h.b16 %v157
    %v255 = vunpack.c.l.b16 %v158
    %v256 = vunpack.c.h.b16 %v158
    %v257 = vunpack.c.l.b16 %v159
    %v258 = vunpack.c.h.b16 %v159
    %v259 = vunpack.c.l.b16 %v160
    %v260 = vunpack.c.h.b16 %v160
    %v261 = vunpack.c.l.b16 %v161
    %v262 = vunpack.c.h.b16 %v161
    %v263 = vunpack.c.l.b16 %v162
    %v264 = vunpack.c.h.b16 %v162
    %v265 = vunpack.c.l.b16 %v163
    %v266 = vunpack.c.h.b16 %v163
    %v267 = vunpack.c.l.b16 %v164
    %v268 = vunpack.c.h.b16 %v164
    %v269 = vunpack.c.l.b16 %v165
    %v270 = vunpack.c.h.b16 %v165
    %v271 = vunpack.c.l.b16 %v166
    %v272 = vunpack.c.h.b16 %v166
    %v273 = vunpack.c.l.b16 %v167
    %v274 = vunpack.c.h.b16 %v167
    %v275 = vunpack.c.l.b16 %v168
    %v276 = vunpack.c.h.b16 %v168
    %v277 = vpack.c.b16 %v215, %v213
    %v278 = vpack.c.b16 %v216, %v214
    %v279 = vpack.c.b16 %v219, %v217
    %v280 = vpack.c.b16 %v220, %v218
    %v281 = vpack.c.b16 %v223, %v221
    %v282 = vpack.c.b16 %v224, %v222
    %v283 = vpack.c.b16 %v227, %v225
    %v284 = vpack.c.b16 %v228, %v226
    %v285 = vpack.c.b16 %v231, %v229
    %v286 = vpack.c.b16 %v232, %v230
    %v287 = vpack.c.b16 %v235, %v233
    %v288 = vpack.c.b16 %v236, %v234
    %v289 = vpack.c.b16 %v239, %v237
    %v290 = vpack.c.b16 %v240, %v238
    %v291 = vpack.c.b16 %v243, %v241
    %v292 = vpack.c.b16 %v244, %v242
    %v293 = vpack.c.b16 %v247, %v245
    %v294 = vpack.c.b16 %v248, %v246
    %v295 = vpack.c.b16 %v251, %v249
    %v296 = vpack.c.b16 %v252, %v250
    %v297 = vpack.c.b16 %v255, %v253
    %v298 = vpack.c.b16 %v256, %v254
    %v299 = vpack.c.b16 %v259, %v257
    %v300 = vpack.c.b16 %v260, %v258
    %v301 = vpack.c.b16 %v263, %v261
    %v302 = vpack.c.b16 %v264, %v262
    %v303 = vpack.c.b16 %v267, %v265
    %v304 = vpack.c.b16 %v268, %v266
    %v305 = vpack.c.b16 %v271, %v269
    %v306 = vpack.c.b16 %v272, %v270
    %v307 = vpack.c.b16 %v275, %v273
    %v308 = vpack.c.b16 %v276, %v274
    %341 = vmatprep.subr.bf16.mxu0 %v292
    %342 = vmatpush1.bf16.msra.mxu0 %v291
    %343 = vmatprep.subr.bf16.mxu0 %v290
    %344 = vmatpush1.bf16.msra.mxu0 %v289
    %345 = vmatprep.subr.bf16.mxu0 %v288
    %346 = vmatpush1.bf16.msra.mxu0 %v287
    %347 = vmatprep.subr.bf16.mxu0 %v286
    %348 = vmatpush1.bf16.msra.mxu0 %v285
    %349 = vmatprep.subr.bf16.mxu0 %v284
    %350 = vmatpush1.bf16.msra.mxu0 %v283
    %351 = vmatprep.subr.bf16.mxu0 %v282
    %352 = vmatpush1.bf16.msra.mxu0 %v281
    %353 = vmatprep.subr.bf16.mxu0 %v280
    %354 = vmatpush1.bf16.msra.mxu0 %v279
    %355 = vmatprep.subr.bf16.mxu0 %v278
    %356 = vmatpush1.bf16.msra.mxu0 %v277
    %357 = vmatprep.subr.bf16.mxu0 %v308
    %358 = vmatpush2.bf16.msra.mxu0 %v307
    %359 = vmatprep.subr.bf16.mxu0 %v306
    %360 = vmatpush2.bf16.msra.mxu0 %v305
    %361 = vmatprep.subr.bf16.mxu0 %v304
    %362 = vmatpush2.bf16.msra.mxu0 %v303
    %363 = vmatprep.subr.bf16.mxu0 %v302
    %364 = vmatpush2.bf16.msra.mxu0 %v301
    %365 = vmatprep.subr.bf16.mxu0 %v300
    %366 = vmatpush2.bf16.msra.mxu0 %v299
    %367 = vmatprep.subr.bf16.mxu0 %v298
    %368 = vmatpush2.bf16.msra.mxu0 %v297
    %369 = vmatprep.subr.bf16.mxu0 %v296
    %370 = vmatpush2.bf16.msra.mxu0 %v295
    %371 = vmatprep.subr.bf16.mxu0 %v294
    %372 = vmatpush2.bf16.msra.mxu0 %v293
    %373 = vmatprep.mubr.bf16.mxu0 %v136
    %374 = vmatmul.mubr.bf16.gmra.mxu0 %v135
    %v375 = vpop.f32.mrf.mxu0
    %v376 = vadd.f32 %v174, %v375
    %v377 = vpop.f32.mrf.mxu0
    %v378 = vadd.f32 %v178, %v377
    %v379 = vpop.f32.mrf.mxu0
    %v380 = vpop.f32.mrf.mxu0
    %381 = vdwg.mxu0
    %v382 = vmul.f32 %v376, %v93
    %v383 = vmul.f32 %v378, %v93
    %v385 = vrot.slane %v93, 6
    %v387 = vmul.f32 %v376, %v385
    %v388 = vmul.f32 %v378, %v385
    %v391 = vcombine.low %v382, %v383
    %v393 = vunpack.c.l.s4 1966171168
    %v394 = vunpack.c.0.s8 %v393
    %v395 = vlaneseq
    %v396 = vshrl.u32 %v395, 7
    %v397 = vsub.s32 %v394, %v396
    %v398 = vrot.slane %v391, %v397
    %v399 = vcombine.high %v398, %v398
    %v401 = vunpack.c.l.s4 1966171168
    %v402 = vunpack.c.0.s8 %v401
    %v403 = vlaneseq
    %v404 = vshrl.u32 %v403, 7
    %v405 = vsub.s32 %v402, %v404
    %v406 = vrot.slane %v398, %v405
    %v408 = vunpack.c.l.s4 1966171168
    %v409 = vunpack.c.0.s8 %v408
    %v410 = vlaneseq
    %v411 = vshrl.u32 %v410, 7
    %v412 = vsub.s32 %v409, %v411
    %v413 = vrot.slane %v399, %v412
    %v416 = vlaneseq
    %vm417 = vcmp.ge.s32.totalorder %v416, 0
    %vm418 = vcmp.lt.s32.totalorder %v416, 256
    %vm419 = vmand %vm417, %vm418
    %420 = vst.msk [vmem:[#allocation5] ss:$2 sm:$0x3] %vm419, %v406
    %s421 = scalar_lea.vmem [#allocation5], 4
    %422 = vst.msk [vmem:[%s421] ss:$2 sm:$0x3] %vm419, %v413
    %v425 = vcombine.low %v387, %v388
    %v427 = vunpack.c.l.s4 1966171168
    %v428 = vunpack.c.0.s8 %v427
    %v429 = vlaneseq
    %v430 = vshrl.u32 %v429, 7
    %v431 = vsub.s32 %v428, %v430
    %v432 = vrot.slane %v425, %v431
    %v433 = vcombine.high %v432, %v432
    %v435 = vunpack.c.l.s4 1966171168
    %v436 = vunpack.c.0.s8 %v435
    %v437 = vlaneseq
    %v438 = vshrl.u32 %v437, 7
    %v439 = vsub.s32 %v436, %v438
    %v440 = vrot.slane %v432, %v439
    %v442 = vunpack.c.l.s4 1966171168
    %v443 = vunpack.c.0.s8 %v442
    %v444 = vlaneseq
    %v445 = vshrl.u32 %v444, 7
    %v446 = vsub.s32 %v443, %v445
    %v447 = vrot.slane %v433, %v446
    %v448 = vcombine.high %v440, %v440
    %v449 = vcombine.high %v447, %v447
    %s452 = scalar_lea.vmem [#allocation5], 1
    %453 = vst.msk [vmem:[%s452] ss:$2 sm:$0x3] %vm419, %v448
    %s454 = scalar_lea.vmem [#allocation5], 5
    %455 = vst.msk [vmem:[%s454] ss:$2 sm:$0x3] %vm419, %v449
    %v456 = vmul.f32 %v382, %v382
    %v457 = vmul.f32 %v383, %v383
    %v458 = vmul.f32 %v387, %v387
    %v459 = vmul.f32 %v388, %v388
    %v462 = vrot.slane %v458, 2
    %v463 = vrot.slane %v459, 2
    %v466 = vadd.f32 %v456, %v462
    %v467 = vadd.f32 %v457, %v463
    %v468 = vrcp.pop %v466
    %v469 = vrcp.pop %v467
    %v470 = vmul.f32 %v382, %v468
    %v471 = vmul.f32 %v383, %v469
    %v474 = vcombine.low %v470, %v471
    %v476 = vunpack.c.l.s4 1966171168
    %v477 = vunpack.c.0.s8 %v476
    %v478 = vlaneseq
    %v479 = vshrl.u32 %v478, 7
    %v480 = vsub.s32 %v477, %v479
    %v481 = vrot.slane %v474, %v480
    %v482 = vcombine.high %v481, %v481
    %v484 = vunpack.c.l.s4 1966171168
    %v485 = vunpack.c.0.s8 %v484
    %v486 = vlaneseq
    %v487 = vshrl.u32 %v486, 7
    %v488 = vsub.s32 %v485, %v487
    %v489 = vrot.slane %v481, %v488
    %v491 = vunpack.c.l.s4 1966171168
    %v492 = vunpack.c.0.s8 %v491
    %v493 = vlaneseq
    %v494 = vshrl.u32 %v493, 7
    %v495 = vsub.s32 %v492, %v494
    %v496 = vrot.slane %v482, %v495
    %v499 = vrot.slane %v468, 6
    %v500 = vrot.slane %v469, 6
    %v503 = vmul.f32 %v387, %v499
    %v504 = vmul.f32 %v388, %v500
    %v507 = vcombine.low %v503, %v504
    %v509 = vunpack.c.l.s4 1966171168
    %v510 = vunpack.c.0.s8 %v509
    %v511 = vlaneseq
    %v512 = vshrl.u32 %v511, 7
    %v513 = vsub.s32 %v510, %v512
    %v514 = vrot.slane %v507, %v513
    %v515 = vcombine.high %v514, %v514
    %v517 = vunpack.c.l.s4 1966171168
    %v518 = vunpack.c.0.s8 %v517
    %v519 = vlaneseq
    %v520 = vshrl.u32 %v519, 7
    %v521 = vsub.s32 %v518, %v520
    %v522 = vrot.slane %v514, %v521
    %v524 = vunpack.c.l.s4 1966171168
    %v525 = vunpack.c.0.s8 %v524
    %v526 = vlaneseq
    %v527 = vshrl.u32 %v526, 7
    %v528 = vsub.s32 %v525, %v527
    %v529 = vrot.slane %v515, %v528
    %v530 = vcombine.high %v522, %v522
    %v531 = vcombine.high %v529, %v529
    %v532 = vlaneseq
    %v533 = vshrl.u32 %v532, 7
    %v534 = vsub.s32 0, %v533
    %v535 = vrot.slane %v489, %v534
    %v536 = vlaneseq
    %v537 = vshrl.u32 %v536, 7
    %v538 = vsub.s32 1, %v537
    %v539 = vrot.slane %v489, %v538
    %v540 = vlaneseq
    %v541 = vshrl.u32 %v540, 7
    %v542 = vsub.s32 0, %v541
    %v543 = vrot.slane %v496, %v542
    %v544 = vlaneseq
    %v545 = vshrl.u32 %v544, 7
    %v546 = vsub.s32 1, %v545
    %v547 = vrot.slane %v496, %v546
    %v552 = vmul.f32 %v34, %v535
    %v553 = vmul.f32 %v35, %v539
    %v554 = vmul.f32 %v36, %v543
    %v555 = vmul.f32 %v37, %v547
    %v556 = vlaneseq
    %v557 = vshrl.u32 %v556, 7
    %v558 = vsub.s32 0, %v557
    %v559 = vrot.slane %v530, %v558
    %v560 = vlaneseq
    %v561 = vshrl.u32 %v560, 7
    %v562 = vsub.s32 1, %v561
    %v563 = vrot.slane %v530, %v562
    %v564 = vlaneseq
    %v565 = vshrl.u32 %v564, 7
    %v566 = vsub.s32 0, %v565
    %v567 = vrot.slane %v531, %v566
    %v568 = vlaneseq
    %v569 = vshrl.u32 %v568, 7
    %v570 = vsub.s32 1, %v569
    %v571 = vrot.slane %v531, %v570
    %v576 = vmul.f32 %v34, %v559
    %v577 = vmul.f32 %v35, %v563
    %v578 = vmul.f32 %v36, %v567
    %v579 = vmul.f32 %v37, %v571
    %v584 = vrot.slane %v576, 4
    %v585 = vrot.slane %v577, 4
    %v586 = vrot.slane %v578, 4
    %v587 = vrot.slane %v579, 4
    %v592 = vadd.f32 %v552, %v584
    %v593 = vadd.f32 %v553, %v585
    %v594 = vadd.f32 %v554, %v586
    %v595 = vadd.f32 %v555, %v587
    %596 = vst [vmem:[%s5] sm:$0xf] %v592
    %597 = vst [vmem:[%s5 + $0x8] sm:$0xf] %v593
    %598 = vst [vmem:[%s5 + $0x10] sm:$0xf] %v594
    %599 = vst [vmem:[%s5 + $0x18] sm:$0xf] %v595
    %v600 = vsub.f32 %v552, %v584
    %v601 = vsub.f32 %v553, %v585
    %v602 = vsub.f32 %v554, %v586
    %v603 = vsub.f32 %v555, %v587
    %604 = vst [vmem:[%s5] sm:$0xf0] %v600
    %605 = vst [vmem:[%s5 + $0x8] sm:$0xf0] %v601
    %606 = vst [vmem:[%s5 + $0x10] sm:$0xf0] %v602
    %607 = vst [vmem:[%s5 + $0x18] sm:$0xf0] %v603
    // Predicated region
    $region22: #{forward.1} parent=1 // pred_check
      _
    $region23: #{forward.1} parent=1 // pred_check_branch
      %609 = sbr.rel (0) target = $region25
    $region24: #{forward.1} parent=1 // pred_region
      %s611 = ssub.s32 128, 128
      %612 = vsyncadd [#allocation4], %s611
      %s613 = sshll.u32 [#allocation5], 4
      %s614 = int_to_ptr.vmem [resolvable:$true] %s613
      %619 = dma.vmem_to_hbm [thread:$0]  %s614, 128, %s4, [#allocation4], 64, 64, 4
    $region25: #{forward.1} parent=1 // pred_fallthru
      _
    // Predicated region
    $region26: #{forward.1} parent=1 // pred_check
      _
    $region27: #{forward.1} parent=1 // pred_check_branch
      %621 = sbr.rel (0) target = $region29
    $region28: #{forward.1} parent=1 // pred_region
      _
    $region29: #{forward.1} parent=1 // pred_fallthru
      _
    // Predicated region
    $region30: #{forward.1} parent=1 // pred_check
      _
    $region31: #{forward.1} parent=1 // pred_check_branch
      %623 = sbr.rel (0) target = $region33
    $region32: #{forward.1} parent=1 // pred_region
      %624 = dma.done [#allocation4], 128
    $region33: #{forward.1} parent=1 // pred_fallthru
      _
    // Predicated region
    $region34: #{forward.1} parent=1 // pred_check
      _
    $region35: #{forward.1} parent=1 // pred_check_branch
      %626 = sbr.rel (0) target = $region37
    $region36: #{forward.1} parent=1 // pred_region
      _
    $region37: #{forward.1} parent=1 // pred_fallthru
      _
    %627 = vsyncpa [#allocation3], 1
    %628 = vsyncpa [#allocation4], 1

</llo_original>
